<compile_context>
chip_gen: v6e
topology: v6e:2x2x1
jax: 0.10.0
libtpu: 0.0.40
codegen_flags: <defaults>
</compile_context>

<pallas_src>
import functools

import jax
import jax.numpy as jnp
from jax.experimental import pallas as pl
from jax.experimental.pallas import tpu as pltpu


def _round_up(v, m):
    return (v + m - 1) // m * m


def _rbf_kernel_2d(xn_ref, yn_ref, x_ref, y_ref, o_ref, *, scale):
    """Single-shot path: whole feature dim resident. dot -> add -> clamp -> exp."""
    dot = jax.lax.dot_general(
        x_ref[...], y_ref[...],
        dimension_numbers=(((1,), (1,)), ((), ())),   # contract last dims, no y.T
        preferred_element_type=jnp.float32,
    )                                                  # (tn, tm) f32
    d2 = xn_ref[...] - 2.0 * dot + yn_ref[...]         # (tn,1)+(tn,tm)+(1,tm)
    d2 = jnp.maximum(d2, 0.0)                          # guard fp cancellation
    o_ref[...] = jnp.exp(-scale * d2).astype(o_ref.dtype)


def _rbf_kernel_3d(xn_ref, yn_ref, x_ref, y_ref, o_ref, *, scale):
    """Fallback for large D: reduce over k, accumulate into resident f32 o_ref."""
    k = pl.program_id(2)

    @pl.when(k == 0)
    def _init():
        o_ref[...] = jnp.zeros_like(o_ref)

    o_ref[...] += jax.lax.dot_general(
        x_ref[...], y_ref[...],
        dimension_numbers=(((1,), (1,)), ((), ())),
        preferred_element_type=jnp.float32,
    )

    @pl.when(k == pl.num_programs(2) - 1)
    def _finalize():
        d2 = xn_ref[...] - 2.0 * o_ref[...] + yn_ref[...]
        d2 = jnp.maximum(d2, 0.0)
        o_ref[...] = jnp.exp(-scale * d2)


def rbf_kernel(x, y, *, scale=1.0, tn=512, tm=256, tk=1024,
               max_single_shot_d=None, use_bf16_matmul=False,
               out_dtype=jnp.float32, vmem_budget_bytes=48 << 20):
    """Pallas TPU implementation of RBFKernel.forward(x, y)."""
    N, D = x.shape
    M, Dy = y.shape
    assert D == Dy, "feature dims must match"

    # bf16 inputs (or opt-in cast) feed the bf16-native MXU; otherwise f32.
    compute_dtype = (jnp.bfloat16
                     if (x.dtype == jnp.bfloat16 or use_bf16_matmul)
                     else jnp.float32)
    in_itemsize = jnp.dtype(compute_dtype).itemsize
    out_itemsize = jnp.dtype(out_dtype).itemsize

    if max_single_shot_d is None:
        max_single_shot_d = 8192 if in_itemsize == 2 else 4096

    # Feature-dim padding / single-shot decision.
    Dp = _round_up(D, 128)
    single_shot = Dp <= max_single_shot_d
    if not single_shot:
        tk = min(tk, Dp)
        Dp = _round_up(D, tk)

    # Clamp tiles to the (aligned) problem size.
    tn = min(tn, _round_up(N, 8))
    tm = min(tm, _round_up(M, 128))

    # Shrink tiles to fit the VMEM budget (double-buffered inputs + norms + out).
    def _footprint(_tn, _tm):
        k_elems = Dp if single_shot else tk
        inp = 2 * (_tn + _tm) * k_elems * in_itemsize
        norms = 2 * (_tn * 128 + 8 * _tm) * 4          # (tn,1)/(1,tm) tiles padded
        o_item = out_itemsize if single_shot else 4    # 3D path accumulates in f32
        out = 2 * _tn * _tm * o_item
        return inp + norms + out

    while _footprint(tn, tm) > vmem_budget_bytes and tn > 8:
        tn = max(8, _round_up(tn // 2, 8))
    while _footprint(tn, tm) > vmem_budget_bytes and tm > 128:
        tm = max(128, _round_up(tm // 2, 128))

    Np = _round_up(N, tn)
    Mp = _round_up(M, tm)

    # Pad / cast only when actually needed (zero padding is exact for dots).
    xp = jnp.pad(x, ((0, Np - N), (0, Dp - D))) if (Np != N or Dp != D) else x
    if xp.dtype != compute_dtype:
        xp = xp.astype(compute_dtype)
    yp = jnp.pad(y, ((0, Mp - M), (0, Dp - D))) if (Mp != M or Dp != D) else y
    if yp.dtype != compute_dtype:
        yp = yp.astype(compute_dtype)

    # Row norms from the ORIGINAL inputs (always f32), padded to tile multiples.
    xn = jnp.sum(x.astype(jnp.float32) ** 2, axis=1, keepdims=True)     # (N, 1)
    if Np != N:
        xn = jnp.pad(xn, ((0, Np - N), (0, 0)))
    yn = jnp.sum(y.astype(jnp.float32) ** 2, axis=1, keepdims=True)     # (M, 1)
    if Mp != M:
        yn = jnp.pad(yn, ((0, Mp - M), (0, 0)))
    yn = yn.T                                                           # (1, Mp)

    kernel_scale = float(scale)
    vmem_limit = int(min(max(_footprint(tn, tm) * 1.25 + (2 << 20), 32 << 20),
                         64 << 20))

    if single_shot:
        # Pick the orientation with lower HBM traffic:
        #   x-stationary (i outer, j inner): bytes(x) + (Np/tn) * bytes(y)
        #   y-stationary (j outer, i inner): bytes(y) + (Mp/tm) * bytes(x)
        x_bytes = Np * Dp * in_itemsize
        y_bytes = Mp * Dp * in_itemsize
        x_stationary = (x_bytes + (Np // tn) * y_bytes
                        <= y_bytes + (Mp // tm) * x_bytes)
        if x_stationary:
            grid = (Np // tn, Mp // tm)
            in_specs = [
                pl.BlockSpec((tn, 1), lambda i, j: (i, 0)),    # x row-norms
                pl.BlockSpec((1, tm), lambda i, j: (0, j)),    # y row-norms
                pl.BlockSpec((tn, Dp), lambda i, j: (i, 0)),   # x tile (full D)
                pl.BlockSpec((tm, Dp), lambda i, j: (j, 0)),   # y tile (full D)
            ]
            out_specs = pl.BlockSpec((tn, tm), lambda i, j: (i, j))
        else:
            grid = (Mp // tm, Np // tn)
            in_specs = [
                pl.BlockSpec((tn, 1), lambda j, i: (i, 0)),
                pl.BlockSpec((1, tm), lambda j, i: (0, j)),
                pl.BlockSpec((tn, Dp), lambda j, i: (i, 0)),
                pl.BlockSpec((tm, Dp), lambda j, i: (j, 0)),
            ]
            out_specs = pl.BlockSpec((tn, tm), lambda j, i: (i, j))
        kernel = functools.partial(_rbf_kernel_2d, scale=kernel_scale)
        dims = ("parallel", "parallel")
        pallas_out_dtype = out_dtype
    else:
        grid = (Np // tn, Mp // tm, Dp // tk)
        in_specs = [
            pl.BlockSpec((tn, 1), lambda i, j, k: (i, 0)),
            pl.BlockSpec((1, tm), lambda i, j, k: (0, j)),
            pl.BlockSpec((tn, tk), lambda i, j, k: (i, k)),
            pl.BlockSpec((tm, tk), lambda i, j, k: (j, k)),
        ]
        out_specs = pl.BlockSpec((tn, tm), lambda i, j, k: (i, j))
        kernel = functools.partial(_rbf_kernel_3d, scale=kernel_scale)
        dims = ("parallel", "parallel", "arbitrary")
        pallas_out_dtype = jnp.float32   # resident accumulator stays exact

    out = pl.pallas_call(
        kernel,
        out_shape=jax.ShapeDtypeStruct((Np, Mp), pallas_out_dtype),
        grid_spec=pltpu.PrefetchScalarGridSpec(
            num_scalar_prefetch=0,
            grid=grid,
            in_specs=in_specs,
            out_specs=out_specs,
        ),
        compiler_params=pltpu.CompilerParams(
            dimension_semantics=dims,
            vmem_limit_bytes=vmem_limit,
        ),
    )(xn, yn, xp, yp)

    out = out[:N, :M]
    if out.dtype != out_dtype:
        out = out.astype(out_dtype)
    return out


def rbf_kernel_ref(x, y, scale=1.0):
    """Pure-JAX reference matching the PyTorch forward exactly."""
    x_norm = jnp.sum(x.astype(jnp.float32) ** 2, axis=1, keepdims=True)
    y_norm = jnp.sum(y.astype(jnp.float32) ** 2, axis=1, keepdims=True)
    d2 = x_norm - 2.0 * (x.astype(jnp.float32) @ y.astype(jnp.float32).T) + y_norm.T
    return jnp.exp(-scale * d2)


if __name__ == "__main__":
    key = jax.random.PRNGKey(0)
    kx, ky = jax.random.split(key)

    N, M, D = 256, 192, 160          # exercises row/col/feature zero-padding
    scale = 1.0 / D                  # keeps exp() away from underflow so the
                                     # comparison is numerically meaningful

    x = jax.random.normal(kx, (N, D), dtype=jnp.float32)
    y = jax.random.normal(ky, (M, D), dtype=jnp.float32)

    ref = rbf_kernel_ref(x, y, scale=scale)

    # 1) Single-shot 2D path (full feature dim resident), f32.
    out = jax.block_until_ready(rbf_kernel(x, y, scale=scale))
    assert out.shape == (N, M)
    assert jnp.allclose(out, ref, atol=1e-4, rtol=1e-4), "2D path mismatch"

    # 2) 3D fallback path (forced feature-dim reduction), f32.
    out3 = jax.block_until_ready(
        rbf_kernel(x, y, scale=scale, tk=128, max_single_shot_d=0))
    assert out3.shape == (N, M)
    assert jnp.allclose(out3, ref, atol=1e-4, rtol=1e-4), "3D path mismatch"

    # 3) y-stationary orientation (N >> M flips the streaming choice).
    N2, M2 = 1024, 64
    x2 = jax.random.normal(kx, (N2, D), dtype=jnp.float32)
    y2 = jax.random.normal(ky, (M2, D), dtype=jnp.float32)
    ref2 = rbf_kernel_ref(x2, y2, scale=scale)
    out_sw = jax.block_until_ready(rbf_kernel(x2, y2, scale=scale))
    assert out_sw.shape == (N2, M2)
    assert jnp.allclose(out_sw, ref2, atol=1e-4, rtol=1e-4), "swapped-orientation mismatch"

    # 4) Opt-in bf16 matmul (norms stay f32) — looser tolerance.
    out_bf = jax.block_until_ready(rbf_kernel(x, y, scale=scale, use_bf16_matmul=True))
    assert jnp.allclose(out_bf, ref, atol=5e-3, rtol=5e-3), "bf16-matmul path mismatch"

    # 5) bf16 output (halves output write traffic) — bf16 quantization tolerance.
    out_b16 = jax.block_until_ready(rbf_kernel(x, y, scale=scale, out_dtype=jnp.bfloat16))
    assert out_b16.dtype == jnp.bfloat16
    assert jnp.allclose(out_b16.astype(jnp.float32), ref, atol=1e-2, rtol=1e-2), \
        "bf16-output path mismatch"

    print("KERNEL_OK")
</pallas_src>

<mosaic_0001>
module attributes {stable_mosaic.version = 11 : i64} {
  func.func @_rbf_kernel_2d(%arg0: i32, %arg1: i32, %arg2: memref<256x1xf32, #tpu.memory_space<vmem>>, %arg3: memref<1x256xf32, #tpu.memory_space<vmem>>, %arg4: memref<256x256xf32, #tpu.memory_space<vmem>>, %arg5: memref<256x256xf32, #tpu.memory_space<vmem>>, %arg6: memref<256x256xf32, #tpu.memory_space<vmem>>) attributes {dimension_semantics = [#tpu.dimension_semantics<parallel>, #tpu.dimension_semantics<parallel>], iteration_bounds = array<i64: 1, 1>, scalar_prefetch = 0 : i64, scratch_operands = 0 : i64, tpu.core_type = #tpu.core_type<tc>, window_params = [{transform_indices = @transform_0, window_bounds = array<i64: 256, 1>}, {transform_indices = @transform_1, window_bounds = array<i64: 1, 256>}, {transform_indices = @transform_2, window_bounds = array<i64: 256, 256>}, {transform_indices = @transform_3, window_bounds = array<i64: 256, 256>}, {transform_indices = @transform_4, window_bounds = array<i64: 256, 256>}]} {
    %c0 = arith.constant 0 : index
    %c0_0 = arith.constant 0 : index
    %0 = vector.load %arg4[%c0, %c0_0] : memref<256x256xf32, #tpu.memory_space<vmem>>, vector<256x256xf32>
    %c0_1 = arith.constant 0 : index
    %c0_2 = arith.constant 0 : index
    %1 = vector.load %arg5[%c0_1, %c0_2] : memref<256x256xf32, #tpu.memory_space<vmem>>, vector<256x256xf32>
    %cst = arith.constant dense<0.000000e+00> : vector<256x256xf32>
    %2 = tpu.matmul %0, %1, %cst {dimension_numbers = #tpu.dot_dimension_numbers<[1], [1], [0], [0], [0, 0, 1, 0], [], []>} : vector<256x256xf32>, vector<256x256xf32>, vector<256x256xf32> -> vector<256x256xf32>
    %c0_3 = arith.constant 0 : index
    %c0_4 = arith.constant 0 : index
    %3 = vector.load %arg2[%c0_3, %c0_4] : memref<256x1xf32, #tpu.memory_space<vmem>>, vector<256x1xf32>
    %cst_5 = arith.constant 2.000000e+00 : f32
    %4 = vector.broadcast %cst_5 : f32 to vector<256x256xf32>
    %5 = arith.mulf %4, %2 : vector<256x256xf32>
    %6 = vector.broadcast %3 : vector<256x1xf32> to vector<256x256xf32>
    %7 = arith.subf %6, %5 : vector<256x256xf32>
    %c0_6 = arith.constant 0 : index
    %c0_7 = arith.constant 0 : index
    %8 = vector.load %arg3[%c0_6, %c0_7] : memref<1x256xf32, #tpu.memory_space<vmem>>, vector<1x256xf32>
    %9 = vector.broadcast %8 : vector<1x256xf32> to vector<256x256xf32>
    %10 = arith.addf %7, %9 : vector<256x256xf32>
    %cst_8 = arith.constant 0.000000e+00 : f32
    %11 = vector.broadcast %cst_8 : f32 to vector<256x256xf32>
    %12 = arith.maximumf %10, %11 : vector<256x256xf32>
    %cst_9 = arith.constant -6.250000e-03 : f32
    %13 = vector.broadcast %cst_9 : f32 to vector<256x256xf32>
    %14 = arith.mulf %13, %12 : vector<256x256xf32>
    %15 = math.exp %14 : vector<256x256xf32>
    %c0_10 = arith.constant 0 : index
    %c0_11 = arith.constant 0 : index
    %16 = vector.load %arg6[%c0_10, %c0_11] : memref<256x256xf32, #tpu.memory_space<vmem>>, vector<256x256xf32>
    tpu.vector_store %arg6[%c0_10, %c0_11], %15 {strides = array<i32>} : memref<256x256xf32, #tpu.memory_space<vmem>>, vector<256x256xf32>,
    return
  }
  func.func @transform_0(%arg0: i32, %arg1: i32) -> (i32, i32) {
    %c0_i32 = arith.constant 0 : i32
    %c0_i32_0 = arith.constant 0 : i32
    return %arg0, %c0_i32 : i32, i32
  }
  func.func @transform_1(%arg0: i32, %arg1: i32) -> (i32, i32) {
    %c0_i32 = arith.constant 0 : i32
    %c0_i32_0 = arith.constant 0 : i32
    return %c0_i32, %arg1 : i32, i32
  }
  func.func @transform_2(%arg0: i32, %arg1: i32) -> (i32, i32) {
    %c0_i32 = arith.constant 0 : i32
    %c0_i32_0 = arith.constant 0 : i32
    return %arg0, %c0_i32 : i32, i32
  }
  func.func @transform_3(%arg0: i32, %arg1: i32) -> (i32, i32) {
    %c0_i32 = arith.constant 0 : i32
    %c0_i32_0 = arith.constant 0 : i32
    return %arg1, %c0_i32 : i32, i32
  }
  func.func @transform_4(%arg0: i32, %arg1: i32) -> (i32, i32) {
    %c0_i32 = arith.constant 0 : i32
    return %arg0, %arg1 : i32, i32
  }
}

</mosaic_0001>

<llo_original>
// kernel: tpu_custom_call.1
$region0: #{tpu_custom_call.1}
  #allocation0 [shape = 'u32[]', space=smem, size = 0x4, offset = 0x4, fixed_abs, tag = 'smem constant byte address 0x4 - core index']
  #allocation1 [shape = 'u32[144,128]{1,0:T(1,128)}', space=vmem, size = 0x12000, scoped, tag = 'internal scratch']
  %s0 = inlined_call_operand.vmem [shape: f32[256,1], index: 0, kind: input, shape index: {}]
  %s1 = inlined_call_operand.vmem [shape: f32[1,256], index: 1, kind: input, shape index: {}]
  %s2 = inlined_call_operand.hbm [shape: f32[256,256], index: 2, kind: input, shape index: {}]
  %s3 = inlined_call_operand.hbm [shape: f32[256,256], index: 3, kind: input, shape index: {}]
  %s4 = inlined_call_operand.hbm [shape: f32[256,256], index: 4, kind: output, shape index: {}]
  %s5 = sld [smem:[#allocation0]]
  $region34: #{tpu_custom_call.1} parent=0
    _
  %s7 = ssub.s32 1, %s5
  %s8 = scalar_select 0, %s7, %s5
  $region1: #{tpu_custom_call.1} parent=0
    #allocation2 [shape = 'u8[262144]{0}', space=vmem, size = 0x40000, scoped, tag = 'input window, operand 2, single buffered']
    #allocation3 [shape = 's32[1]{0}', space=sflag, size = 0x4, scoped, tag = 'scoped memory for tpu_custom_call.1']
    #allocation4 [shape = 's32[1]{0}', space=sflag, size = 0x4, scoped, tag = 'scoped memory for tpu_custom_call.1']
    #allocation5 [shape = 'u8[262144]{0}', space=vmem, size = 0x40000, scoped, tag = 'input window, operand 3, single buffered']
    #allocation6 [shape = 's32[1]{0}', space=sflag, size = 0x4, scoped, tag = 'scoped memory for tpu_custom_call.1']
    #allocation7 [shape = 'u8[262144]{0}', space=vmem, size = 0x40000, scoped, tag = 'output window, operand 0, single buffered']
    %9 = vsyncpa [#allocation3], 0
    %10 = vsyncpa [#allocation6], 0
    %11 = vsyncpa [#allocation4], 0
    // Predicated region
    $region2: #{tpu_custom_call.1} parent=1 // pred_check
      _
    $region3: #{tpu_custom_call.1} parent=1 // pred_check_branch
      %13 = sbr.rel (0) target = $region5
    $region4: #{tpu_custom_call.1} parent=1 // pred_region
      _
    $region5: #{tpu_custom_call.1} parent=1 // pred_fallthru
      _
    // Predicated region
    $region6: #{tpu_custom_call.1} parent=1 // pred_check
      _
    $region7: #{tpu_custom_call.1} parent=1 // pred_check_branch
      %15 = sbr.rel (0) target = $region9
    $region8: #{tpu_custom_call.1} parent=1 // pred_region
      _
    $region9: #{tpu_custom_call.1} parent=1 // pred_fallthru
      _
    // Predicated region
    $region10: #{tpu_custom_call.1} parent=1 // pred_check
      _
    $region11: #{tpu_custom_call.1} parent=1 // pred_check_branch
      %17 = sbr.rel (0) target = $region13
    $region12: #{tpu_custom_call.1} parent=1 // pred_region
      %s19 = ssub.s32 8192, 8192
      %20 = vsyncadd [#allocation3], %s19
      %s21 = sshll.u32 [#allocation2], 4
      %s22 = int_to_ptr.vmem [resolvable:$true] %s21
      %27 = dma.hbm_to_vmem [thread:$0]  %s2, 8192, %s22, [#allocation3], 256, 256, 16
    $region13: #{tpu_custom_call.1} parent=1 // pred_fallthru
      _
    // Predicated region
    $region14: #{tpu_custom_call.1} parent=1 // pred_check
      _
    $region15: #{tpu_custom_call.1} parent=1 // pred_check_branch
      %29 = sbr.rel (0) target = $region17
    $region16: #{tpu_custom_call.1} parent=1 // pred_region
      %s31 = ssub.s32 8192, 8192
      %32 = vsyncadd [#allocation6], %s31
      %s33 = sshll.u32 [#allocation5], 4
      %s34 = int_to_ptr.vmem [resolvable:$true] %s33
      %39 = dma.hbm_to_vmem [thread:$0]  %s3, 8192, %s34, [#allocation6], 256, 256, 16
    $region17: #{tpu_custom_call.1} parent=1 // pred_fallthru
      _
    // Predicated region
    $region18: #{tpu_custom_call.1} parent=1 // pred_check
      _
    $region19: #{tpu_custom_call.1} parent=1 // pred_check_branch
      %41 = sbr.rel (0) target = $region21
    $region20: #{tpu_custom_call.1} parent=1 // pred_region
      %42 = dma.done [#allocation3], 8192
    $region21: #{tpu_custom_call.1} parent=1 // pred_fallthru
      _
    // Predicated region
    $region22: #{tpu_custom_call.1} parent=1 // pred_check
      _
    $region23: #{tpu_custom_call.1} parent=1 // pred_check_branch
      %44 = sbr.rel (0) target = $region25
    $region24: #{tpu_custom_call.1} parent=1 // pred_region
      %45 = dma.done [#allocation6], 8192
    $region25: #{tpu_custom_call.1} parent=1 // pred_fallthru
      _
    %v46 = vld [vmem:[#allocation2] sm:$0xff]
    %v47 = vld [vmem:[#allocation2 + $0x8] sm:$0xff]
    %v48 = vld [vmem:[#allocation2 + $0x10] sm:$0xff]
    %v49 = vld [vmem:[#allocation2 + $0x18] sm:$0xff]
    %v50 = vld [vmem:[#allocation2 + $0x20] sm:$0xff]
    %v51 = vld [vmem:[#allocation2 + $0x28] sm:$0xff]
    %v52 = vld [vmem:[#allocation2 + $0x30] sm:$0xff]
    %v53 = vld [vmem:[#allocation2 + $0x38] sm:$0xff]
    %v54 = vld [vmem:[#allocation2 + $0x40] sm:$0xff]
    %v55 = vld [vmem:[#allocation2 + $0x48] sm:$0xff]
    %v56 = vld [vmem:[#allocation2 + $0x50] sm:$0xff]
    %v57 = vld [vmem:[#allocation2 + $0x58] sm:$0xff]
    %v58 = vld [vmem:[#allocation2 + $0x60] sm:$0xff]
    %v59 = vld [vmem:[#allocation2 + $0x68] sm:$0xff]
    %v60 = vld [vmem:[#allocation2 + $0x70] sm:$0xff]
    %v61 = vld [vmem:[#allocation2 + $0x78] sm:$0xff]
    %v62 = vld [vmem:[#allocation2 + $0x80] sm:$0xff]
    %v63 = vld [vmem:[#allocation2 + $0x88] sm:$0xff]
    %v64 = vld [vmem:[#allocation2 + $0x90] sm:$0xff]
    %v65 = vld [vmem:[#allocation2 + $0x98] sm:$0xff]
    %v66 = vld [vmem:[#allocation2 + $0xa0] sm:$0xff]
    %v67 = vld [vmem:[#allocation2 + $0xa8] sm:$0xff]
    %v68 = vld [vmem:[#allocation2 + $0xb0] sm:$0xff]
    %v69 = vld [vmem:[#allocation2 + $0xb8] sm:$0xff]
    %v70 = vld [vmem:[#allocation2 + $0xc0] sm:$0xff]
    %v71 = vld [vmem:[#allocation2 + $0xc8] sm:$0xff]
    %v72 = vld [vmem:[#allocation2 + $0xd0] sm:$0xff]
    %v73 = vld [vmem:[#allocation2 + $0xd8] sm:$0xff]
    %v74 = vld [vmem:[#allocation2 + $0xe0] sm:$0xff]
    %v75 = vld [vmem:[#allocation2 + $0xe8] sm:$0xff]
    %v76 = vld [vmem:[#allocation2 + $0xf0] sm:$0xff]
    %v77 = vld [vmem:[#allocation2 + $0xf8] sm:$0xff]
    %v78 = vld [vmem:[#allocation2 + $0x100] sm:$0xff]
    %v79 = vld [vmem:[#allocation2 + $0x108] sm:$0xff]
    %v80 = vld [vmem:[#allocation2 + $0x110] sm:$0xff]
    %v81 = vld [vmem:[#allocation2 + $0x118] sm:$0xff]
    %v82 = vld [vmem:[#allocation2 + $0x120] sm:$0xff]
    %v83 = vld [vmem:[#allocation2 + $0x128] sm:$0xff]
    %v84 = vld [vmem:[#allocation2 + $0x130] sm:$0xff]
    %v85 = vld [vmem:[#allocation2 + $0x138] sm:$0xff]
    %v86 = vld [vmem:[#allocation2 + $0x140] sm:$0xff]
    %v87 = vld [vmem:[#allocation2 + $0x148] sm:$0xff]
    %v88 = vld [vmem:[#allocation2 + $0x150] sm:$0xff]
    %v89 = vld [vmem:[#allocation2 + $0x158] sm:$0xff]
    %v90 = vld [vmem:[#allocation2 + $0x160] sm:$0xff]
    %v91 = vld [vmem:[#allocation2 + $0x168] sm:$0xff]
    %v92 = vld [vmem:[#allocation2 + $0x170] sm:$0xff]
    %v93 = vld [vmem:[#allocation2 + $0x178] sm:$0xff]
    %v94 = vld [vmem:[#allocation2 + $0x180] sm:$0xff]
    %v95 = vld [vmem:[#allocation2 + $0x188] sm:$0xff]
    %v96 = vld [vmem:[#allocation2 + $0x190] sm:$0xff]
    %v97 = vld [vmem:[#allocation2 + $0x198] sm:$0xff]
    %v98 = vld [vmem:[#allocation2 + $0x1a0] sm:$0xff]
    %v99 = vld [vmem:[#allocation2 + $0x1a8] sm:$0xff]
    %v100 = vld [vmem:[#allocation2 + $0x1b0] sm:$0xff]
    %v101 = vld [vmem:[#allocation2 + $0x1b8] sm:$0xff]
    %v102 = vld [vmem:[#allocation2 + $0x1c0] sm:$0xff]
    %v103 = vld [vmem:[#allocation2 + $0x1c8] sm:$0xff]
    %v104 = vld [vmem:[#allocation2 + $0x1d0] sm:$0xff]
    %v105 = vld [vmem:[#allocation2 + $0x1d8] sm:$0xff]
    %v106 = vld [vmem:[#allocation2 + $0x1e0] sm:$0xff]
    %v107 = vld [vmem:[#allocation2 + $0x1e8] sm:$0xff]
    %v108 = vld [vmem:[#allocation2 + $0x1f0] sm:$0xff]
    %v109 = vld [vmem:[#allocation2 + $0x1f8] sm:$0xff]
    %v110 = vld [vmem:[#allocation5] sm:$0xff]
    %v111 = vld [vmem:[#allocation5 + $0x8] sm:$0xff]
    %v112 = vld [vmem:[#allocation5 + $0x10] sm:$0xff]
    %v113 = vld [vmem:[#allocation5 + $0x18] sm:$0xff]
    %v114 = vld [vmem:[#allocation5 + $0x20] sm:$0xff]
    %v115 = vld [vmem:[#allocation5 + $0x28] sm:$0xff]
    %v116 = vld [vmem:[#allocation5 + $0x30] sm:$0xff]
    %v117 = vld [vmem:[#allocation5 + $0x38] sm:$0xff]
    %v118 = vld [vmem:[#allocation5 + $0x40] sm:$0xff]
    %v119 = vld [vmem:[#allocation5 + $0x48] sm:$0xff]
    %v120 = vld [vmem:[#allocation5 + $0x50] sm:$0xff]
    %v121 = vld [vmem:[#allocation5 + $0x58] sm:$0xff]
    %v122 = vld [vmem:[#allocation5 + $0x60] sm:$0xff]
    %v123 = vld [vmem:[#allocation5 + $0x68] sm:$0xff]
    %v124 = vld [vmem:[#allocation5 + $0x70] sm:$0xff]
    %v125 = vld [vmem:[#allocation5 + $0x78] sm:$0xff]
    %v126 = vld [vmem:[#allocation5 + $0x80] sm:$0xff]
    %v127 = vld [vmem:[#allocation5 + $0x88] sm:$0xff]
    %v128 = vld [vmem:[#allocation5 + $0x90] sm:$0xff]
    %v129 = vld [vmem:[#allocation5 + $0x98] sm:$0xff]
    %v130 = vld [vmem:[#allocation5 + $0xa0] sm:$0xff]
    %v131 = vld [vmem:[#allocation5 + $0xa8] sm:$0xff]
    %v132 = vld [vmem:[#allocation5 + $0xb0] sm:$0xff]
    %v133 = vld [vmem:[#allocation5 + $0xb8] sm:$0xff]
    %v134 = vld [vmem:[#allocation5 + $0xc0] sm:$0xff]
    %v135 = vld [vmem:[#allocation5 + $0xc8] sm:$0xff]
    %v136 = vld [vmem:[#allocation5 + $0xd0] sm:$0xff]
    %v137 = vld [vmem:[#allocation5 + $0xd8] sm:$0xff]
    %v138 = vld [vmem:[#allocation5 + $0xe0] sm:$0xff]
    %v139 = vld [vmem:[#allocation5 + $0xe8] sm:$0xff]
    %v140 = vld [vmem:[#allocation5 + $0xf0] sm:$0xff]
    %v141 = vld [vmem:[#allocation5 + $0xf8] sm:$0xff]
    %v142 = vld [vmem:[#allocation5 + $0x100] sm:$0xff]
    %v143 = vld [vmem:[#allocation5 + $0x108] sm:$0xff]
    %v144 = vld [vmem:[#allocation5 + $0x110] sm:$0xff]
    %v145 = vld [vmem:[#allocation5 + $0x118] sm:$0xff]
    %v146 = vld [vmem:[#allocation5 + $0x120] sm:$0xff]
    %v147 = vld [vmem:[#allocation5 + $0x128] sm:$0xff]
    %v148 = vld [vmem:[#allocation5 + $0x130] sm:$0xff]
    %v149 = vld [vmem:[#allocation5 + $0x138] sm:$0xff]
    %v150 = vld [vmem:[#allocation5 + $0x140] sm:$0xff]
    %v151 = vld [vmem:[#allocation5 + $0x148] sm:$0xff]
    %v152 = vld [vmem:[#allocation5 + $0x150] sm:$0xff]
    %v153 = vld [vmem:[#allocation5 + $0x158] sm:$0xff]
    %v154 = vld [vmem:[#allocation5 + $0x160] sm:$0xff]
    %v155 = vld [vmem:[#allocation5 + $0x168] sm:$0xff]
    %v156 = vld [vmem:[#allocation5 + $0x170] sm:$0xff]
    %v157 = vld [vmem:[#allocation5 + $0x178] sm:$0xff]
    %v158 = vld [vmem:[#allocation5 + $0x180] sm:$0xff]
    %v159 = vld [vmem:[#allocation5 + $0x188] sm:$0xff]
    %v160 = vld [vmem:[#allocation5 + $0x190] sm:$0xff]
    %v161 = vld [vmem:[#allocation5 + $0x198] sm:$0xff]
    %v162 = vld [vmem:[#allocation5 + $0x1a0] sm:$0xff]
    %v163 = vld [vmem:[#allocation5 + $0x1a8] sm:$0xff]
    %v164 = vld [vmem:[#allocation5 + $0x1b0] sm:$0xff]
    %v165 = vld [vmem:[#allocation5 + $0x1b8] sm:$0xff]
    %v166 = vld [vmem:[#allocation5 + $0x1c0] sm:$0xff]
    %v167 = vld [vmem:[#allocation5 + $0x1c8] sm:$0xff]
    %v168 = vld [vmem:[#allocation5 + $0x1d0] sm:$0xff]
    %v169 = vld [vmem:[#allocation5 + $0x1d8] sm:$0xff]
    %v170 = vld [vmem:[#allocation5 + $0x1e0] sm:$0xff]
    %v171 = vld [vmem:[#allocation5 + $0x1e8] sm:$0xff]
    %v172 = vld [vmem:[#allocation5 + $0x1f0] sm:$0xff]
    %v173 = vld [vmem:[#allocation5 + $0x1f8] sm:$0xff]
    %174 = vmatprep.subr.mxu0 %v141
    %175 = vmatpush1.xpose.msra.mxu0 %v140
    %176 = vmatprep.subr.mxu0 %v139
    %177 = vmatpush1.xpose.msra.mxu0 %v138
    %178 = vmatprep.subr.mxu0 %v137
    %179 = vmatpush1.xpose.msra.mxu0 %v136
    %180 = vmatprep.subr.mxu0 %v135
    %181 = vmatpush1.xpose.msra.mxu0 %v134
    %182 = vmatprep.subr.mxu0 %v133
    %183 = vmatpush1.xpose.msra.mxu0 %v132
    %184 = vmatprep.subr.mxu0 %v131
    %185 = vmatpush1.xpose.msra.mxu0 %v130
    %186 = vmatprep.subr.mxu0 %v129
    %187 = vmatpush1.xpose.msra.mxu0 %v128
    %188 = vmatprep.subr.mxu0 %v127
    %189 = vmatpush1.xpose.msra.mxu0 %v126
    %190 = vmatprep.subr.mxu0 %v125
    %191 = vmatpush1.xpose.msra.mxu0 %v124
    %192 = vmatprep.subr.mxu0 %v123
    %193 = vmatpush1.xpose.msra.mxu0 %v122
    %194 = vmatprep.subr.mxu0 %v121
    %195 = vmatpush1.xpose.msra.mxu0 %v120
    %196 = vmatprep.subr.mxu0 %v119
    %197 = vmatpush1.xpose.msra.mxu0 %v118
    %198 = vmatprep.subr.mxu0 %v117
    %199 = vmatpush1.xpose.msra.mxu0 %v116
    %200 = vmatprep.subr.mxu0 %v115
    %201 = vmatpush1.xpose.msra.mxu0 %v114
    %202 = vmatprep.subr.mxu0 %v113
    %203 = vmatpush1.xpose.msra.mxu0 %v112
    %204 = vmatprep.subr.mxu0 %v111
    %205 = vmatpush1.xpose.msra.mxu0 %v110
    %206 = vmatprep.subr.mxu0 %v173
    %207 = vmatpush2.xpose.msra.mxu0 %v172
    %208 = vmatprep.subr.mxu0 %v171
    %209 = vmatpush2.xpose.msra.mxu0 %v170
    %210 = vmatprep.subr.mxu0 %v169
    %211 = vmatpush2.xpose.msra.mxu0 %v168
    %212 = vmatprep.subr.mxu0 %v167
    %213 = vmatpush2.xpose.msra.mxu0 %v166
    %214 = vmatprep.subr.mxu0 %v165
    %215 = vmatpush2.xpose.msra.mxu0 %v164
    %216 = vmatprep.subr.mxu0 %v163
    %217 = vmatpush2.xpose.msra.mxu0 %v162
    %218 = vmatprep.subr.mxu0 %v161
    %219 = vmatpush2.xpose.msra.mxu0 %v160
    %220 = vmatprep.subr.mxu0 %v159
    %221 = vmatpush2.xpose.msra.mxu0 %v158
    %222 = vmatprep.subr.mxu0 %v157
    %223 = vmatpush2.xpose.msra.mxu0 %v156
    %224 = vmatprep.subr.mxu0 %v155
    %225 = vmatpush2.xpose.msra.mxu0 %v154
    %226 = vmatprep.subr.mxu0 %v153
    %227 = vmatpush2.xpose.msra.mxu0 %v152
    %228 = vmatprep.subr.mxu0 %v151
    %229 = vmatpush2.xpose.msra.mxu0 %v150
    %230 = vmatprep.subr.mxu0 %v149
    %231 = vmatpush2.xpose.msra.mxu0 %v148
    %232 = vmatprep.subr.mxu0 %v147
    %233 = vmatpush2.xpose.msra.mxu0 %v146
    %234 = vmatprep.subr.mxu0 %v145
    %235 = vmatpush2.xpose.msra.mxu0 %v144
    %236 = vmatprep.subr.mxu0 %v143
    %237 = vmatpush2.xpose.msra.mxu0 %v142
    %238 = vmatprep.mubr.f32.mxu0 %v47
    %239 = vmatmul.mubr.f32.gmra.mxu0 %v46
    %v240 = vpop.f32.mrf.mxu0
    %v241 = vadd.f32 0.0, %v240
    %v242 = vpop.f32.mrf.mxu0
    %v243 = vadd.f32 0.0, %v242
    %244 = vmatprep.mubr.f32.mxu0 %v49
    %245 = vmatmul.mubr.f32.gmra.mxu0 %v48
    %v246 = vpop.f32.mrf.mxu0
    %v247 = vadd.f32 0.0, %v246
    %v248 = vpop.f32.mrf.mxu0
    %v249 = vadd.f32 0.0, %v248
    %250 = vmatprep.mubr.f32.mxu0 %v51
    %251 = vmatmul.mubr.f32.gmra.mxu0 %v50
    %v252 = vpop.f32.mrf.mxu0
    %v253 = vadd.f32 0.0, %v252
    %v254 = vpop.f32.mrf.mxu0
    %v255 = vadd.f32 0.0, %v254
    %256 = vmatprep.mubr.f32.mxu0 %v53
    %257 = vmatmul.mubr.f32.gmra.mxu0 %v52
    %v258 = vpop.f32.mrf.mxu0
    %v259 = vadd.f32 0.0, %v258
    %v260 = vpop.f32.mrf.mxu0
    %v261 = vadd.f32 0.0, %v260
    %262 = vmatprep.mubr.f32.mxu0 %v55
    %263 = vmatmul.mubr.f32.gmra.mxu0 %v54
    %v264 = vpop.f32.mrf.mxu0
    %v265 = vadd.f32 0.0, %v264
    %v266 = vpop.f32.mrf.mxu0
    %v267 = vadd.f32 0.0, %v266
    %268 = vmatprep.mubr.f32.mxu0 %v57
    %269 = vmatmul.mubr.f32.gmra.mxu0 %v56
    %v270 = vpop.f32.mrf.mxu0
    %v271 = vadd.f32 0.0, %v270
    %v272 = vpop.f32.mrf.mxu0
    %v273 = vadd.f32 0.0, %v272
    %274 = vmatprep.mubr.f32.mxu0 %v59
    %275 = vmatmul.mubr.f32.gmra.mxu0 %v58
    %v276 = vpop.f32.mrf.mxu0
    %v277 = vadd.f32 0.0, %v276
    %v278 = vpop.f32.mrf.mxu0
    %v279 = vadd.f32 0.0, %v278
    %280 = vmatprep.mubr.f32.mxu0 %v61
    %281 = vmatmul.mubr.f32.gmra.mxu0 %v60
    %v282 = vpop.f32.mrf.mxu0
    %v283 = vadd.f32 0.0, %v282
    %v284 = vpop.f32.mrf.mxu0
    %v285 = vadd.f32 0.0, %v284
    %286 = vmatprep.mubr.f32.mxu0 %v63
    %287 = vmatmul.mubr.f32.gmra.mxu0 %v62
    %v288 = vpop.f32.mrf.mxu0
    %v289 = vadd.f32 0.0, %v288
    %v290 = vpop.f32.mrf.mxu0
    %v291 = vadd.f32 0.0, %v290
    %292 = vmatprep.mubr.f32.mxu0 %v65
    %293 = vmatmul.mubr.f32.gmra.mxu0 %v64
    %v294 = vpop.f32.mrf.mxu0
    %v295 = vadd.f32 0.0, %v294
    %v296 = vpop.f32.mrf.mxu0
    %v297 = vadd.f32 0.0, %v296
    %298 = vmatprep.mubr.f32.mxu0 %v67
    %299 = vmatmul.mubr.f32.gmra.mxu0 %v66
    %v300 = vpop.f32.mrf.mxu0
    %v301 = vadd.f32 0.0, %v300
    %v302 = vpop.f32.mrf.mxu0
    %v303 = vadd.f32 0.0, %v302
    %304 = vmatprep.mubr.f32.mxu0 %v69
    %305 = vmatmul.mubr.f32.gmra.mxu0 %v68
    %v306 = vpop.f32.mrf.mxu0
    %v307 = vadd.f32 0.0, %v306
    %v308 = vpop.f32.mrf.mxu0
    %v309 = vadd.f32 0.0, %v308
    %310 = vmatprep.mubr.f32.mxu0 %v71
    %311 = vmatmul.mubr.f32.gmra.mxu0 %v70
    %v312 = vpop.f32.mrf.mxu0
    %v313 = vadd.f32 0.0, %v312
    %v314 = vpop.f32.mrf.mxu0
    %v315 = vadd.f32 0.0, %v314
    %316 = vmatprep.mubr.f32.mxu0 %v73
    %317 = vmatmul.mubr.f32.gmra.mxu0 %v72
    %v318 = vpop.f32.mrf.mxu0
    %v319 = vadd.f32 0.0, %v318
    %v320 = vpop.f32.mrf.mxu0
    %v321 = vadd.f32 0.0, %v320
    %322 = vmatprep.mubr.f32.mxu0 %v75
    %323 = vmatmul.mubr.f32.gmra.mxu0 %v74
    %v324 = vpop.f32.mrf.mxu0
    %v325 = vadd.f32 0.0, %v324
    %v326 = vpop.f32.mrf.mxu0
    %v327 = vadd.f32 0.0, %v326
    %328 = vmatprep.mubr.f32.mxu0 %v77
    %329 = vmatmul.mubr.f32.gmra.mxu0 %v76
    %v330 = vpop.f32.mrf.mxu0
    %v331 = vadd.f32 0.0, %v330
    %v332 = vpop.f32.mrf.mxu0
    %v333 = vadd.f32 0.0, %v332
    %334 = vmatprep.mubr.f32.mxu0 %v79
    %335 = vmatmul.mubr.f32.gmra.mxu0 %v78
    %v336 = vpop.f32.mrf.mxu0
    %v337 = vadd.f32 0.0, %v336
    %v338 = vpop.f32.mrf.mxu0
    %v339 = vadd.f32 0.0, %v338
    %340 = vmatprep.mubr.f32.mxu0 %v81
    %341 = vmatmul.mubr.f32.gmra.mxu0 %v80
    %v342 = vpop.f32.mrf.mxu0
    %v343 = vadd.f32 0.0, %v342
    %v344 = vpop.f32.mrf.mxu0
    %v345 = vadd.f32 0.0, %v344
    %346 = vmatprep.mubr.f32.mxu0 %v83
    %347 = vmatmul.mubr.f32.gmra.mxu0 %v82
    %v348 = vpop.f32.mrf.mxu0
    %v349 = vadd.f32 0.0, %v348
    %v350 = vpop.f32.mrf.mxu0
    %v351 = vadd.f32 0.0, %v350
    %352 = vmatprep.mubr.f32.mxu0 %v85
    %353 = vmatmul.mubr.f32.gmra.mxu0 %v84
    %v354 = vpop.f32.mrf.mxu0
    %v355 = vadd.f32 0.0, %v354
    %v356 = vpop.f32.mrf.mxu0
    %v357 = vadd.f32 0.0, %v356
    %358 = vmatprep.mubr.f32.mxu0 %v87
    %359 = vmatmul.mubr.f32.gmra.mxu0 %v86
    %v360 = vpop.f32.mrf.mxu0
    %v361 = vadd.f32 0.0, %v360
    %v362 = vpop.f32.mrf.mxu0
    %v363 = vadd.f32 0.0, %v362
    %364 = vmatprep.mubr.f32.mxu0 %v89
    %365 = vmatmul.mubr.f32.gmra.mxu0 %v88
    %v366 = vpop.f32.mrf.mxu0
    %v367 = vadd.f32 0.0, %v366
    %v368 = vpop.f32.mrf.mxu0
    %v369 = vadd.f32 0.0, %v368
    %370 = vmatprep.mubr.f32.mxu0 %v91
    %371 = vmatmul.mubr.f32.gmra.mxu0 %v90
    %v372 = vpop.f32.mrf.mxu0
    %v373 = vadd.f32 0.0, %v372
    %v374 = vpop.f32.mrf.mxu0
    %v375 = vadd.f32 0.0, %v374
    %376 = vmatprep.mubr.f32.mxu0 %v93
    %377 = vmatmul.mubr.f32.gmra.mxu0 %v92
    %v378 = vpop.f32.mrf.mxu0
    %v379 = vadd.f32 0.0, %v378
    %v380 = vpop.f32.mrf.mxu0
    %v381 = vadd.f32 0.0, %v380
    %382 = vmatprep.mubr.f32.mxu0 %v95
    %383 = vmatmul.mubr.f32.gmra.mxu0 %v94
    %v384 = vpop.f32.mrf.mxu0
    %v385 = vadd.f32 0.0, %v384
    %v386 = vpop.f32.mrf.mxu0
    %v387 = vadd.f32 0.0, %v386
    %388 = vmatprep.mubr.f32.mxu0 %v97
    %389 = vmatmul.mubr.f32.gmra.mxu0 %v96
    %v390 = vpop.f32.mrf.mxu0
    %v391 = vadd.f32 0.0, %v390
    %v392 = vpop.f32.mrf.mxu0
    %v393 = vadd.f32 0.0, %v392
    %394 = vmatprep.mubr.f32.mxu0 %v99
    %395 = vmatmul.mubr.f32.gmra.mxu0 %v98
    %v396 = vpop.f32.mrf.mxu0
    %v397 = vadd.f32 0.0, %v396
    %v398 = vpop.f32.mrf.mxu0
    %v399 = vadd.f32 0.0, %v398
    %400 = vmatprep.mubr.f32.mxu0 %v101
    %401 = vmatmul.mubr.f32.gmra.mxu0 %v100
    %v402 = vpop.f32.mrf.mxu0
    %v403 = vadd.f32 0.0, %v402
    %v404 = vpop.f32.mrf.mxu0
    %v405 = vadd.f32 0.0, %v404
    %406 = vmatprep.mubr.f32.mxu0 %v103
    %407 = vmatmul.mubr.f32.gmra.mxu0 %v102
    %v408 = vpop.f32.mrf.mxu0
    %v409 = vadd.f32 0.0, %v408
    %v410 = vpop.f32.mrf.mxu0
    %v411 = vadd.f32 0.0, %v410
    %412 = vmatprep.mubr.f32.mxu0 %v105
    %413 = vmatmul.mubr.f32.gmra.mxu0 %v104
    %v414 = vpop.f32.mrf.mxu0
    %v415 = vadd.f32 0.0, %v414
    %v416 = vpop.f32.mrf.mxu0
    %v417 = vadd.f32 0.0, %v416
    %418 = vmatprep.mubr.f32.mxu0 %v107
    %419 = vmatmul.mubr.f32.gmra.mxu0 %v106
    %v420 = vpop.f32.mrf.mxu0
    %v421 = vadd.f32 0.0, %v420
    %v422 = vpop.f32.mrf.mxu0
    %v423 = vadd.f32 0.0, %v422
    %424 = vmatprep.mubr.f32.mxu0 %v109
    %425 = vmatmul.mubr.f32.gmra.mxu0 %v108
    %v426 = vpop.f32.mrf.mxu0
    %v427 = vadd.f32 0.0, %v426
    %v428 = vpop.f32.mrf.mxu0
    %v429 = vadd.f32 0.0, %v428
    %430 = vdwg.mxu0
    %v431 = vld [vmem:[%s0] sm:$0xff]
    %v432 = vld [vmem:[%s0 + $0x8] sm:$0xff]
    %v433 = vld [vmem:[%s0 + $0x10] sm:$0xff]
    %v434 = vld [vmem:[%s0 + $0x18] sm:$0xff]
    %v435 = vld [vmem:[%s0 + $0x20] sm:$0xff]
    %v436 = vld [vmem:[%s0 + $0x28] sm:$0xff]
    %v437 = vld [vmem:[%s0 + $0x30] sm:$0xff]
    %v438 = vld [vmem:[%s0 + $0x38] sm:$0xff]
    %v439 = vld [vmem:[%s0 + $0x40] sm:$0xff]
    %v440 = vld [vmem:[%s0 + $0x48] sm:$0xff]
    %v441 = vld [vmem:[%s0 + $0x50] sm:$0xff]
    %v442 = vld [vmem:[%s0 + $0x58] sm:$0xff]
    %v443 = vld [vmem:[%s0 + $0x60] sm:$0xff]
    %v444 = vld [vmem:[%s0 + $0x68] sm:$0xff]
    %v445 = vld [vmem:[%s0 + $0x70] sm:$0xff]
    %v446 = vld [vmem:[%s0 + $0x78] sm:$0xff]
    %v447 = vld [vmem:[%s0 + $0x80] sm:$0xff]
    %v448 = vld [vmem:[%s0 + $0x88] sm:$0xff]
    %v449 = vld [vmem:[%s0 + $0x90] sm:$0xff]
    %v450 = vld [vmem:[%s0 + $0x98] sm:$0xff]
    %v451 = vld [vmem:[%s0 + $0xa0] sm:$0xff]
    %v452 = vld [vmem:[%s0 + $0xa8] sm:$0xff]
    %v453 = vld [vmem:[%s0 + $0xb0] sm:$0xff]
    %v454 = vld [vmem:[%s0 + $0xb8] sm:$0xff]
    %v455 = vld [vmem:[%s0 + $0xc0] sm:$0xff]
    %v456 = vld [vmem:[%s0 + $0xc8] sm:$0xff]
    %v457 = vld [vmem:[%s0 + $0xd0] sm:$0xff]
    %v458 = vld [vmem:[%s0 + $0xd8] sm:$0xff]
    %v459 = vld [vmem:[%s0 + $0xe0] sm:$0xff]
    %v460 = vld [vmem:[%s0 + $0xe8] sm:$0xff]
    %v461 = vld [vmem:[%s0 + $0xf0] sm:$0xff]
    %v462 = vld [vmem:[%s0 + $0xf8] sm:$0xff]
    %v463 = vmul.f32 %v241, 2.0
    %v464 = vmul.f32 %v243, 2.0
    %v465 = vmul.f32 %v247, 2.0
    %v466 = vmul.f32 %v249, 2.0
    %v467 = vmul.f32 %v253, 2.0
    %v468 = vmul.f32 %v255, 2.0
    %v469 = vmul.f32 %v259, 2.0
    %v470 = vmul.f32 %v261, 2.0
    %v471 = vmul.f32 %v265, 2.0
    %v472 = vmul.f32 %v267, 2.0
    %v473 = vmul.f32 %v271, 2.0
    %v474 = vmul.f32 %v273, 2.0
    %v475 = vmul.f32 %v277, 2.0
    %v476 = vmul.f32 %v279, 2.0
    %v477 = vmul.f32 %v283, 2.0
    %v478 = vmul.f32 %v285, 2.0
    %v479 = vmul.f32 %v289, 2.0
    %v480 = vmul.f32 %v291, 2.0
    %v481 = vmul.f32 %v295, 2.0
    %v482 = vmul.f32 %v297, 2.0
    %v483 = vmul.f32 %v301, 2.0
    %v484 = vmul.f32 %v303, 2.0
    %v485 = vmul.f32 %v307, 2.0
    %v486 = vmul.f32 %v309, 2.0
    %v487 = vmul.f32 %v313, 2.0
    %v488 = vmul.f32 %v315, 2.0
    %v489 = vmul.f32 %v319, 2.0
    %v490 = vmul.f32 %v321, 2.0
    %v491 = vmul.f32 %v325, 2.0
    %v492 = vmul.f32 %v327, 2.0
    %v493 = vmul.f32 %v331, 2.0
    %v494 = vmul.f32 %v333, 2.0
    %v495 = vmul.f32 %v337, 2.0
    %v496 = vmul.f32 %v339, 2.0
    %v497 = vmul.f32 %v343, 2.0
    %v498 = vmul.f32 %v345, 2.0
    %v499 = vmul.f32 %v349, 2.0
    %v500 = vmul.f32 %v351, 2.0
    %v501 = vmul.f32 %v355, 2.0
    %v502 = vmul.f32 %v357, 2.0
    %v503 = vmul.f32 %v361, 2.0
    %v504 = vmul.f32 %v363, 2.0
    %v505 = vmul.f32 %v367, 2.0
    %v506 = vmul.f32 %v369, 2.0
    %v507 = vmul.f32 %v373, 2.0
    %v508 = vmul.f32 %v375, 2.0
    %v509 = vmul.f32 %v379, 2.0
    %v510 = vmul.f32 %v381, 2.0
    %v511 = vmul.f32 %v385, 2.0
    %v512 = vmul.f32 %v387, 2.0
    %v513 = vmul.f32 %v391, 2.0
    %v514 = vmul.f32 %v393, 2.0
    %v515 = vmul.f32 %v397, 2.0
    %v516 = vmul.f32 %v399, 2.0
    %v517 = vmul.f32 %v403, 2.0
    %v518 = vmul.f32 %v405, 2.0
    %v519 = vmul.f32 %v409, 2.0
    %v520 = vmul.f32 %v411, 2.0
    %v521 = vmul.f32 %v415, 2.0
    %v522 = vmul.f32 %v417, 2.0
    %v523 = vmul.f32 %v421, 2.0
    %v524 = vmul.f32 %v423, 2.0
    %v525 = vmul.f32 %v427, 2.0
    %v526 = vmul.f32 %v429, 2.0
    %528 = vset.pattern.permute.xlu0 0
    %529 = vperm.xlu0 %528, %v431
    %v530 = vpop.permute.xlu0 %529
    %533 = vset.pattern.permute.xlu0 0
    %534 = vperm.xlu0 %533, %v432
    %v535 = vpop.permute.xlu0 %534
    %538 = vset.pattern.permute.xlu0 0
    %539 = vperm.xlu0 %538, %v433
    %v540 = vpop.permute.xlu0 %539
    %543 = vset.pattern.permute.xlu0 0
    %544 = vperm.xlu0 %543, %v434
    %v545 = vpop.permute.xlu0 %544
    %548 = vset.pattern.permute.xlu0 0
    %549 = vperm.xlu0 %548, %v435
    %v550 = vpop.permute.xlu0 %549
    %553 = vset.pattern.permute.xlu0 0
    %554 = vperm.xlu0 %553, %v436
    %v555 = vpop.permute.xlu0 %554
    %558 = vset.pattern.permute.xlu0 0
    %559 = vperm.xlu0 %558, %v437
    %v560 = vpop.permute.xlu0 %559
    %563 = vset.pattern.permute.xlu0 0
    %564 = vperm.xlu0 %563, %v438
    %v565 = vpop.permute.xlu0 %564
    %568 = vset.pattern.permute.xlu0 0
    %569 = vperm.xlu0 %568, %v439
    %v570 = vpop.permute.xlu0 %569
    %573 = vset.pattern.permute.xlu0 0
    %574 = vperm.xlu0 %573, %v440
    %v575 = vpop.permute.xlu0 %574
    %578 = vset.pattern.permute.xlu0 0
    %579 = vperm.xlu0 %578, %v441
    %v580 = vpop.permute.xlu0 %579
    %583 = vset.pattern.permute.xlu0 0
    %584 = vperm.xlu0 %583, %v442
    %v585 = vpop.permute.xlu0 %584
    %588 = vset.pattern.permute.xlu0 0
    %589 = vperm.xlu0 %588, %v443
    %v590 = vpop.permute.xlu0 %589
    %593 = vset.pattern.permute.xlu0 0
    %594 = vperm.xlu0 %593, %v444
    %v595 = vpop.permute.xlu0 %594
    %598 = vset.pattern.permute.xlu0 0
    %599 = vperm.xlu0 %598, %v445
    %v600 = vpop.permute.xlu0 %599
    %603 = vset.pattern.permute.xlu0 0
    %604 = vperm.xlu0 %603, %v446
    %v605 = vpop.permute.xlu0 %604
    %608 = vset.pattern.permute.xlu0 0
    %609 = vperm.xlu0 %608, %v447
    %v610 = vpop.permute.xlu0 %609
    %613 = vset.pattern.permute.xlu0 0
    %614 = vperm.xlu0 %613, %v448
    %v615 = vpop.permute.xlu0 %614
    %618 = vset.pattern.permute.xlu0 0
    %619 = vperm.xlu0 %618, %v449
    %v620 = vpop.permute.xlu0 %619
    %623 = vset.pattern.permute.xlu0 0
    %624 = vperm.xlu0 %623, %v450
    %v625 = vpop.permute.xlu0 %624
    %628 = vset.pattern.permute.xlu0 0
    %629 = vperm.xlu0 %628, %v451
    %v630 = vpop.permute.xlu0 %629
    %633 = vset.pattern.permute.xlu0 0
    %634 = vperm.xlu0 %633, %v452
    %v635 = vpop.permute.xlu0 %634
    %638 = vset.pattern.permute.xlu0 0
    %639 = vperm.xlu0 %638, %v453
    %v640 = vpop.permute.xlu0 %639
    %643 = vset.pattern.permute.xlu0 0
    %644 = vperm.xlu0 %643, %v454
    %v645 = vpop.permute.xlu0 %644
    %648 = vset.pattern.permute.xlu0 0
    %649 = vperm.xlu0 %648, %v455
    %v650 = vpop.permute.xlu0 %649
    %653 = vset.pattern.permute.xlu0 0
    %654 = vperm.xlu0 %653, %v456
    %v655 = vpop.permute.xlu0 %654
    %658 = vset.pattern.permute.xlu0 0
    %659 = vperm.xlu0 %658, %v457
    %v660 = vpop.permute.xlu0 %659
    %663 = vset.pattern.permute.xlu0 0
    %664 = vperm.xlu0 %663, %v458
    %v665 = vpop.permute.xlu0 %664
    %668 = vset.pattern.permute.xlu0 0
    %669 = vperm.xlu0 %668, %v459
    %v670 = vpop.permute.xlu0 %669
    %673 = vset.pattern.permute.xlu0 0
    %674 = vperm.xlu0 %673, %v460
    %v675 = vpop.permute.xlu0 %674
    %678 = vset.pattern.permute.xlu0 0
    %679 = vperm.xlu0 %678, %v461
    %v680 = vpop.permute.xlu0 %679
    %683 = vset.pattern.permute.xlu0 0
    %684 = vperm.xlu0 %683, %v462
    %v685 = vpop.permute.xlu0 %684
    %v687 = vsub.f32 %v530, %v463
    %v688 = vsub.f32 %v530, %v464
    %v689 = vsub.f32 %v535, %v465
    %v690 = vsub.f32 %v535, %v466
    %v691 = vsub.f32 %v540, %v467
    %v692 = vsub.f32 %v540, %v468
    %v693 = vsub.f32 %v545, %v469
    %v694 = vsub.f32 %v545, %v470
    %v695 = vsub.f32 %v550, %v471
    %v696 = vsub.f32 %v550, %v472
    %v697 = vsub.f32 %v555, %v473
    %v698 = vsub.f32 %v555, %v474
    %v699 = vsub.f32 %v560, %v475
    %v700 = vsub.f32 %v560, %v476
    %v701 = vsub.f32 %v565, %v477
    %v702 = vsub.f32 %v565, %v478
    %v703 = vsub.f32 %v570, %v479
    %v704 = vsub.f32 %v570, %v480
    %v705 = vsub.f32 %v575, %v481
    %v706 = vsub.f32 %v575, %v482
    %v707 = vsub.f32 %v580, %v483
    %v708 = vsub.f32 %v580, %v484
    %v709 = vsub.f32 %v585, %v485
    %v710 = vsub.f32 %v585, %v486
    %v711 = vsub.f32 %v590, %v487
    %v712 = vsub.f32 %v590, %v488
    %v713 = vsub.f32 %v595, %v489
    %v714 = vsub.f32 %v595, %v490
    %v715 = vsub.f32 %v600, %v491
    %v716 = vsub.f32 %v600, %v492
    %v717 = vsub.f32 %v605, %v493
    %v718 = vsub.f32 %v605, %v494
    %v719 = vsub.f32 %v610, %v495
    %v720 = vsub.f32 %v610, %v496
    %v721 = vsub.f32 %v615, %v497
    %v722 = vsub.f32 %v615, %v498
    %v723 = vsub.f32 %v620, %v499
    %v724 = vsub.f32 %v620, %v500
    %v725 = vsub.f32 %v625, %v501
    %v726 = vsub.f32 %v625, %v502
    %v727 = vsub.f32 %v630, %v503
    %v728 = vsub.f32 %v630, %v504
    %v729 = vsub.f32 %v635, %v505
    %v730 = vsub.f32 %v635, %v506
    %v731 = vsub.f32 %v640, %v507
    %v732 = vsub.f32 %v640, %v508
    %v733 = vsub.f32 %v645, %v509
    %v734 = vsub.f32 %v645, %v510
    %v735 = vsub.f32 %v650, %v511
    %v736 = vsub.f32 %v650, %v512
    %v737 = vsub.f32 %v655, %v513
    %v738 = vsub.f32 %v655, %v514
    %v739 = vsub.f32 %v660, %v515
    %v740 = vsub.f32 %v660, %v516
    %v741 = vsub.f32 %v665, %v517
    %v742 = vsub.f32 %v665, %v518
    %v743 = vsub.f32 %v670, %v519
    %v744 = vsub.f32 %v670, %v520
    %v745 = vsub.f32 %v675, %v521
    %v746 = vsub.f32 %v675, %v522
    %v747 = vsub.f32 %v680, %v523
    %v748 = vsub.f32 %v680, %v524
    %v749 = vsub.f32 %v685, %v525
    %v750 = vsub.f32 %v685, %v526
    %v751 = vld [vmem:[%s1] sm:$0x3]
    %v753 = vlaneseq
    %v754 = vshrl.u32 %v753, 7
    %v755 = vsub.s32 0, %v754
    %v756 = vrot.slane %v751, %v755
    %v757 = vlaneseq
    %v758 = vshrl.u32 %v757, 7
    %v759 = vsub.s32 1, %v758
    %v760 = vrot.slane %v751, %v759
    %v763 = vadd.f32 %v687, %v756
    %v764 = vadd.f32 %v688, %v760
    %v765 = vadd.f32 %v689, %v756
    %v766 = vadd.f32 %v690, %v760
    %v767 = vadd.f32 %v691, %v756
    %v768 = vadd.f32 %v692, %v760
    %v769 = vadd.f32 %v693, %v756
    %v770 = vadd.f32 %v694, %v760
    %v771 = vadd.f32 %v695, %v756
    %v772 = vadd.f32 %v696, %v760
    %v773 = vadd.f32 %v697, %v756
    %v774 = vadd.f32 %v698, %v760
    %v775 = vadd.f32 %v699, %v756
    %v776 = vadd.f32 %v700, %v760
    %v777 = vadd.f32 %v701, %v756
    %v778 = vadd.f32 %v702, %v760
    %v779 = vadd.f32 %v703, %v756
    %v780 = vadd.f32 %v704, %v760
    %v781 = vadd.f32 %v705, %v756
    %v782 = vadd.f32 %v706, %v760
    %v783 = vadd.f32 %v707, %v756
    %v784 = vadd.f32 %v708, %v760
    %v785 = vadd.f32 %v709, %v756
    %v786 = vadd.f32 %v710, %v760
    %v787 = vadd.f32 %v711, %v756
    %v788 = vadd.f32 %v712, %v760
    %v789 = vadd.f32 %v713, %v756
    %v790 = vadd.f32 %v714, %v760
    %v791 = vadd.f32 %v715, %v756
    %v792 = vadd.f32 %v716, %v760
    %v793 = vadd.f32 %v717, %v756
    %v794 = vadd.f32 %v718, %v760
    %v795 = vadd.f32 %v719, %v756
    %v796 = vadd.f32 %v720, %v760
    %v797 = vadd.f32 %v721, %v756
    %v798 = vadd.f32 %v722, %v760
    %v799 = vadd.f32 %v723, %v756
    %v800 = vadd.f32 %v724, %v760
    %v801 = vadd.f32 %v725, %v756
    %v802 = vadd.f32 %v726, %v760
    %v803 = vadd.f32 %v727, %v756
    %v804 = vadd.f32 %v728, %v760
    %v805 = vadd.f32 %v729, %v756
    %v806 = vadd.f32 %v730, %v760
    %v807 = vadd.f32 %v731, %v756
    %v808 = vadd.f32 %v732, %v760
    %v809 = vadd.f32 %v733, %v756
    %v810 = vadd.f32 %v734, %v760
    %v811 = vadd.f32 %v735, %v756
    %v812 = vadd.f32 %v736, %v760
    %v813 = vadd.f32 %v737, %v756
    %v814 = vadd.f32 %v738, %v760
    %v815 = vadd.f32 %v739, %v756
    %v816 = vadd.f32 %v740, %v760
    %v817 = vadd.f32 %v741, %v756
    %v818 = vadd.f32 %v742, %v760
    %v819 = vadd.f32 %v743, %v756
    %v820 = vadd.f32 %v744, %v760
    %v821 = vadd.f32 %v745, %v756
    %v822 = vadd.f32 %v746, %v760
    %v823 = vadd.f32 %v747, %v756
    %v824 = vadd.f32 %v748, %v760
    %v825 = vadd.f32 %v749, %v756
    %v826 = vadd.f32 %v750, %v760
    %v827 = vmax.f32 %v763, 0.0
    %v828 = vmax.f32 %v764, 0.0
    %v829 = vmax.f32 %v765, 0.0
    %v830 = vmax.f32 %v766, 0.0
    %v831 = vmax.f32 %v767, 0.0
    %v832 = vmax.f32 %v768, 0.0
    %v833 = vmax.f32 %v769, 0.0
    %v834 = vmax.f32 %v770, 0.0
    %v835 = vmax.f32 %v771, 0.0
    %v836 = vmax.f32 %v772, 0.0
    %v837 = vmax.f32 %v773, 0.0
    %v838 = vmax.f32 %v774, 0.0
    %v839 = vmax.f32 %v775, 0.0
    %v840 = vmax.f32 %v776, 0.0
    %v841 = vmax.f32 %v777, 0.0
    %v842 = vmax.f32 %v778, 0.0
    %v843 = vmax.f32 %v779, 0.0
    %v844 = vmax.f32 %v780, 0.0
    %v845 = vmax.f32 %v781, 0.0
    %v846 = vmax.f32 %v782, 0.0
    %v847 = vmax.f32 %v783, 0.0
    %v848 = vmax.f32 %v784, 0.0
    %v849 = vmax.f32 %v785, 0.0
    %v850 = vmax.f32 %v786, 0.0
    %v851 = vmax.f32 %v787, 0.0
    %v852 = vmax.f32 %v788, 0.0
    %v853 = vmax.f32 %v789, 0.0
    %v854 = vmax.f32 %v790, 0.0
    %v855 = vmax.f32 %v791, 0.0
    %v856 = vmax.f32 %v792, 0.0
    %v857 = vmax.f32 %v793, 0.0
    %v858 = vmax.f32 %v794, 0.0
    %v859 = vmax.f32 %v795, 0.0
    %v860 = vmax.f32 %v796, 0.0
    %v861 = vmax.f32 %v797, 0.0
    %v862 = vmax.f32 %v798, 0.0
    %v863 = vmax.f32 %v799, 0.0
    %v864 = vmax.f32 %v800, 0.0
    %v865 = vmax.f32 %v801, 0.0
    %v866 = vmax.f32 %v802, 0.0
    %v867 = vmax.f32 %v803, 0.0
    %v868 = vmax.f32 %v804, 0.0
    %v869 = vmax.f32 %v805, 0.0
    %v870 = vmax.f32 %v806, 0.0
    %v871 = vmax.f32 %v807, 0.0
    %v872 = vmax.f32 %v808, 0.0
    %v873 = vmax.f32 %v809, 0.0
    %v874 = vmax.f32 %v810, 0.0
    %v875 = vmax.f32 %v811, 0.0
    %v876 = vmax.f32 %v812, 0.0
    %v877 = vmax.f32 %v813, 0.0
    %v878 = vmax.f32 %v814, 0.0
    %v879 = vmax.f32 %v815, 0.0
    %v880 = vmax.f32 %v816, 0.0
    %v881 = vmax.f32 %v817, 0.0
    %v882 = vmax.f32 %v818, 0.0
    %v883 = vmax.f32 %v819, 0.0
    %v884 = vmax.f32 %v820, 0.0
    %v885 = vmax.f32 %v821, 0.0
    %v886 = vmax.f32 %v822, 0.0
    %v887 = vmax.f32 %v823, 0.0
    %v888 = vmax.f32 %v824, 0.0
    %v889 = vmax.f32 %v825, 0.0
    %v890 = vmax.f32 %v826, 0.0
    %v891 = vmul.f32 %v827, -0.00625
    %v892 = vmul.f32 %v828, -0.00625
    %v893 = vmul.f32 %v829, -0.00625
    %v894 = vmul.f32 %v830, -0.00625
    %v895 = vmul.f32 %v831, -0.00625
    %v896 = vmul.f32 %v832, -0.00625
    %v897 = vmul.f32 %v833, -0.00625
    %v898 = vmul.f32 %v834, -0.00625
    %v899 = vmul.f32 %v835, -0.00625
    %v900 = vmul.f32 %v836, -0.00625
    %v901 = vmul.f32 %v837, -0.00625
    %v902 = vmul.f32 %v838, -0.00625
    %v903 = vmul.f32 %v839, -0.00625
    %v904 = vmul.f32 %v840, -0.00625
    %v905 = vmul.f32 %v841, -0.00625
    %v906 = vmul.f32 %v842, -0.00625
    %v907 = vmul.f32 %v843, -0.00625
    %v908 = vmul.f32 %v844, -0.00625
    %v909 = vmul.f32 %v845, -0.00625
    %v910 = vmul.f32 %v846, -0.00625
    %v911 = vmul.f32 %v847, -0.00625
    %v912 = vmul.f32 %v848, -0.00625
    %v913 = vmul.f32 %v849, -0.00625
    %v914 = vmul.f32 %v850, -0.00625
    %v915 = vmul.f32 %v851, -0.00625
    %v916 = vmul.f32 %v852, -0.00625
    %v917 = vmul.f32 %v853, -0.00625
    %v918 = vmul.f32 %v854, -0.00625
    %v919 = vmul.f32 %v855, -0.00625
    %v920 = vmul.f32 %v856, -0.00625
    %v921 = vmul.f32 %v857, -0.00625
    %v922 = vmul.f32 %v858, -0.00625
    %v923 = vmul.f32 %v859, -0.00625
    %v924 = vmul.f32 %v860, -0.00625
    %v925 = vmul.f32 %v861, -0.00625
    %v926 = vmul.f32 %v862, -0.00625
    %v927 = vmul.f32 %v863, -0.00625
    %v928 = vmul.f32 %v864, -0.00625
    %v929 = vmul.f32 %v865, -0.00625
    %v930 = vmul.f32 %v866, -0.00625
    %v931 = vmul.f32 %v867, -0.00625
    %v932 = vmul.f32 %v868, -0.00625
    %v933 = vmul.f32 %v869, -0.00625
    %v934 = vmul.f32 %v870, -0.00625
    %v935 = vmul.f32 %v871, -0.00625
    %v936 = vmul.f32 %v872, -0.00625
    %v937 = vmul.f32 %v873, -0.00625
    %v938 = vmul.f32 %v874, -0.00625
    %v939 = vmul.f32 %v875, -0.00625
    %v940 = vmul.f32 %v876, -0.00625
    %v941 = vmul.f32 %v877, -0.00625
    %v942 = vmul.f32 %v878, -0.00625
    %v943 = vmul.f32 %v879, -0.00625
    %v944 = vmul.f32 %v880, -0.00625
    %v945 = vmul.f32 %v881, -0.00625
    %v946 = vmul.f32 %v882, -0.00625
    %v947 = vmul.f32 %v883, -0.00625
    %v948 = vmul.f32 %v884, -0.00625
    %v949 = vmul.f32 %v885, -0.00625
    %v950 = vmul.f32 %v886, -0.00625
    %v951 = vmul.f32 %v887, -0.00625
    %v952 = vmul.f32 %v888, -0.00625
    %v953 = vmul.f32 %v889, -0.00625
    %v954 = vmul.f32 %v890, -0.00625
    %v955 = vmul.f32 %v891, 1.442695
    %v956 = vpow.pop %v955
    %v957 = vmul.f32 %v892, 1.442695
    %v958 = vpow.pop %v957
    %v959 = vmul.f32 %v893, 1.442695
    %v960 = vpow.pop %v959
    %v961 = vmul.f32 %v894, 1.442695
    %v962 = vpow.pop %v961
    %v963 = vmul.f32 %v895, 1.442695
    %v964 = vpow.pop %v963
    %v965 = vmul.f32 %v896, 1.442695
    %v966 = vpow.pop %v965
    %v967 = vmul.f32 %v897, 1.442695
    %v968 = vpow.pop %v967
    %v969 = vmul.f32 %v898, 1.442695
    %v970 = vpow.pop %v969
    %v971 = vmul.f32 %v899, 1.442695
    %v972 = vpow.pop %v971
    %v973 = vmul.f32 %v900, 1.442695
    %v974 = vpow.pop %v973
    %v975 = vmul.f32 %v901, 1.442695
    %v976 = vpow.pop %v975
    %v977 = vmul.f32 %v902, 1.442695
    %v978 = vpow.pop %v977
    %v979 = vmul.f32 %v903, 1.442695
    %v980 = vpow.pop %v979
    %v981 = vmul.f32 %v904, 1.442695
    %v982 = vpow.pop %v981
    %v983 = vmul.f32 %v905, 1.442695
    %v984 = vpow.pop %v983
    %v985 = vmul.f32 %v906, 1.442695
    %v986 = vpow.pop %v985
    %v987 = vmul.f32 %v907, 1.442695
    %v988 = vpow.pop %v987
    %v989 = vmul.f32 %v908, 1.442695
    %v990 = vpow.pop %v989
    %v991 = vmul.f32 %v909, 1.442695
    %v992 = vpow.pop %v991
    %v993 = vmul.f32 %v910, 1.442695
    %v994 = vpow.pop %v993
    %v995 = vmul.f32 %v911, 1.442695
    %v996 = vpow.pop %v995
    %v997 = vmul.f32 %v912, 1.442695
    %v998 = vpow.pop %v997
    %v999 = vmul.f32 %v913, 1.442695
    %v1000 = vpow.pop %v999
    %v1001 = vmul.f32 %v914, 1.442695
    %v1002 = vpow.pop %v1001
    %v1003 = vmul.f32 %v915, 1.442695
    %v1004 = vpow.pop %v1003
    %v1005 = vmul.f32 %v916, 1.442695
    %v1006 = vpow.pop %v1005
    %v1007 = vmul.f32 %v917, 1.442695
    %v1008 = vpow.pop %v1007
    %v1009 = vmul.f32 %v918, 1.442695
    %v1010 = vpow.pop %v1009
    %v1011 = vmul.f32 %v919, 1.442695
    %v1012 = vpow.pop %v1011
    %v1013 = vmul.f32 %v920, 1.442695
    %v1014 = vpow.pop %v1013
    %v1015 = vmul.f32 %v921, 1.442695
    %v1016 = vpow.pop %v1015
    %v1017 = vmul.f32 %v922, 1.442695
    %v1018 = vpow.pop %v1017
    %v1019 = vmul.f32 %v923, 1.442695
    %v1020 = vpow.pop %v1019
    %v1021 = vmul.f32 %v924, 1.442695
    %v1022 = vpow.pop %v1021
    %v1023 = vmul.f32 %v925, 1.442695
    %v1024 = vpow.pop %v1023
    %v1025 = vmul.f32 %v926, 1.442695
    %v1026 = vpow.pop %v1025
    %v1027 = vmul.f32 %v927, 1.442695
    %v1028 = vpow.pop %v1027
    %v1029 = vmul.f32 %v928, 1.442695
    %v1030 = vpow.pop %v1029
    %v1031 = vmul.f32 %v929, 1.442695
    %v1032 = vpow.pop %v1031
    %v1033 = vmul.f32 %v930, 1.442695
    %v1034 = vpow.pop %v1033
    %v1035 = vmul.f32 %v931, 1.442695
    %v1036 = vpow.pop %v1035
    %v1037 = vmul.f32 %v932, 1.442695
    %v1038 = vpow.pop %v1037
    %v1039 = vmul.f32 %v933, 1.442695
    %v1040 = vpow.pop %v1039
    %v1041 = vmul.f32 %v934, 1.442695
    %v1042 = vpow.pop %v1041
    %v1043 = vmul.f32 %v935, 1.442695
    %v1044 = vpow.pop %v1043
    %v1045 = vmul.f32 %v936, 1.442695
    %v1046 = vpow.pop %v1045
    %v1047 = vmul.f32 %v937, 1.442695
    %v1048 = vpow.pop %v1047
    %v1049 = vmul.f32 %v938, 1.442695
    %v1050 = vpow.pop %v1049
    %v1051 = vmul.f32 %v939, 1.442695
    %v1052 = vpow.pop %v1051
    %v1053 = vmul.f32 %v940, 1.442695
    %v1054 = vpow.pop %v1053
    %v1055 = vmul.f32 %v941, 1.442695
    %v1056 = vpow.pop %v1055
    %v1057 = vmul.f32 %v942, 1.442695
    %v1058 = vpow.pop %v1057
    %v1059 = vmul.f32 %v943, 1.442695
    %v1060 = vpow.pop %v1059
    %v1061 = vmul.f32 %v944, 1.442695
    %v1062 = vpow.pop %v1061
    %v1063 = vmul.f32 %v945, 1.442695
    %v1064 = vpow.pop %v1063
    %v1065 = vmul.f32 %v946, 1.442695
    %v1066 = vpow.pop %v1065
    %v1067 = vmul.f32 %v947, 1.442695
    %v1068 = vpow.pop %v1067
    %v1069 = vmul.f32 %v948, 1.442695
    %v1070 = vpow.pop %v1069
    %v1071 = vmul.f32 %v949, 1.442695
    %v1072 = vpow.pop %v1071
    %v1073 = vmul.f32 %v950, 1.442695
    %v1074 = vpow.pop %v1073
    %v1075 = vmul.f32 %v951, 1.442695
    %v1076 = vpow.pop %v1075
    %v1077 = vmul.f32 %v952, 1.442695
    %v1078 = vpow.pop %v1077
    %v1079 = vmul.f32 %v953, 1.442695
    %v1080 = vpow.pop %v1079
    %v1081 = vmul.f32 %v954, 1.442695
    %v1082 = vpow.pop %v1081
    %1083 = vst [vmem:[#allocation7] sm:$0xff] %v956
    %1084 = vst [vmem:[#allocation7 + $0x8] sm:$0xff] %v958
    %1085 = vst [vmem:[#allocation7 + $0x10] sm:$0xff] %v960
    %1086 = vst [vmem:[#allocation7 + $0x18] sm:$0xff] %v962
    %1087 = vst [vmem:[#allocation7 + $0x20] sm:$0xff] %v964
    %1088 = vst [vmem:[#allocation7 + $0x28] sm:$0xff] %v966
    %1089 = vst [vmem:[#allocation7 + $0x30] sm:$0xff] %v968
    %1090 = vst [vmem:[#allocation7 + $0x38] sm:$0xff] %v970
    %1091 = vst [vmem:[#allocation7 + $0x40] sm:$0xff] %v972
    %1092 = vst [vmem:[#allocation7 + $0x48] sm:$0xff] %v974
    %1093 = vst [vmem:[#allocation7 + $0x50] sm:$0xff] %v976
    %1094 = vst [vmem:[#allocation7 + $0x58] sm:$0xff] %v978
    %1095 = vst [vmem:[#allocation7 + $0x60] sm:$0xff] %v980
    %1096 = vst [vmem:[#allocation7 + $0x68] sm:$0xff] %v982
    %1097 = vst [vmem:[#allocation7 + $0x70] sm:$0xff] %v984
    %1098 = vst [vmem:[#allocation7 + $0x78] sm:$0xff] %v986
    %1099 = vst [vmem:[#allocation7 + $0x80] sm:$0xff] %v988
    %1100 = vst [vmem:[#allocation7 + $0x88] sm:$0xff] %v990
    %1101 = vst [vmem:[#allocation7 + $0x90] sm:$0xff] %v992
    %1102 = vst [vmem:[#allocation7 + $0x98] sm:$0xff] %v994
    %1103 = vst [vmem:[#allocation7 + $0xa0] sm:$0xff] %v996
    %1104 = vst [vmem:[#allocation7 + $0xa8] sm:$0xff] %v998
    %1105 = vst [vmem:[#allocation7 + $0xb0] sm:$0xff] %v1000
    %1106 = vst [vmem:[#allocation7 + $0xb8] sm:$0xff] %v1002
    %1107 = vst [vmem:[#allocation7 + $0xc0] sm:$0xff] %v1004
    %1108 = vst [vmem:[#allocation7 + $0xc8] sm:$0xff] %v1006
    %1109 = vst [vmem:[#allocation7 + $0xd0] sm:$0xff] %v1008
    %1110 = vst [vmem:[#allocation7 + $0xd8] sm:$0xff] %v1010
    %1111 = vst [vmem:[#allocation7 + $0xe0] sm:$0xff] %v1012
    %1112 = vst [vmem:[#allocation7 + $0xe8] sm:$0xff] %v1014
    %1113 = vst [vmem:[#allocation7 + $0xf0] sm:$0xff] %v1016
    %1114 = vst [vmem:[#allocation7 + $0xf8] sm:$0xff] %v1018
    %1115 = vst [vmem:[#allocation7 + $0x100] sm:$0xff] %v1020
    %1116 = vst [vmem:[#allocation7 + $0x108] sm:$0xff] %v1022
    %1117 = vst [vmem:[#allocation7 + $0x110] sm:$0xff] %v1024
    %1118 = vst [vmem:[#allocation7 + $0x118] sm:$0xff] %v1026
    %1119 = vst [vmem:[#allocation7 + $0x120] sm:$0xff] %v1028
    %1120 = vst [vmem:[#allocation7 + $0x128] sm:$0xff] %v1030
    %1121 = vst [vmem:[#allocation7 + $0x130] sm:$0xff] %v1032
    %1122 = vst [vmem:[#allocation7 + $0x138] sm:$0xff] %v1034
    %1123 = vst [vmem:[#allocation7 + $0x140] sm:$0xff] %v1036
    %1124 = vst [vmem:[#allocation7 + $0x148] sm:$0xff] %v1038
    %1125 = vst [vmem:[#allocation7 + $0x150] sm:$0xff] %v1040
    %1126 = vst [vmem:[#allocation7 + $0x158] sm:$0xff] %v1042
    %1127 = vst [vmem:[#allocation7 + $0x160] sm:$0xff] %v1044
    %1128 = vst [vmem:[#allocation7 + $0x168] sm:$0xff] %v1046
    %1129 = vst [vmem:[#allocation7 + $0x170] sm:$0xff] %v1048
    %1130 = vst [vmem:[#allocation7 + $0x178] sm:$0xff] %v1050
    %1131 = vst [vmem:[#allocation7 + $0x180] sm:$0xff] %v1052
    %1132 = vst [vmem:[#allocation7 + $0x188] sm:$0xff] %v1054
    %1133 = vst [vmem:[#allocation7 + $0x190] sm:$0xff] %v1056
    %1134 = vst [vmem:[#allocation7 + $0x198] sm:$0xff] %v1058
    %1135 = vst [vmem:[#allocation7 + $0x1a0] sm:$0xff] %v1060
    %1136 = vst [vmem:[#allocation7 + $0x1a8] sm:$0xff] %v1062
    %1137 = vst [vmem:[#allocation7 + $0x1b0] sm:$0xff] %v1064
    %1138 = vst [vmem:[#allocation7 + $0x1b8] sm:$0xff] %v1066
    %1139 = vst [vmem:[#allocation7 + $0x1c0] sm:$0xff] %v1068
    %1140 = vst [vmem:[#allocation7 + $0x1c8] sm:$0xff] %v1070
    %1141 = vst [vmem:[#allocation7 + $0x1d0] sm:$0xff] %v1072
    %1142 = vst [vmem:[#allocation7 + $0x1d8] sm:$0xff] %v1074
    %1143 = vst [vmem:[#allocation7 + $0x1e0] sm:$0xff] %v1076
    %1144 = vst [vmem:[#allocation7 + $0x1e8] sm:$0xff] %v1078
    %1145 = vst [vmem:[#allocation7 + $0x1f0] sm:$0xff] %v1080
    %1146 = vst [vmem:[#allocation7 + $0x1f8] sm:$0xff] %v1082
    // Predicated region
    $region26: #{tpu_custom_call.1} parent=1 // pred_check
      _
    $region27: #{tpu_custom_call.1} parent=1 // pred_check_branch
      %1148 = sbr.rel (0) target = $region29
    $region28: #{tpu_custom_call.1} parent=1 // pred_region
      %s1150 = ssub.s32 8192, 8192
      %1151 = vsyncadd [#allocation4], %s1150
      %s1152 = sshll.u32 [#allocation7], 4
      %s1153 = int_to_ptr.vmem [resolvable:$true] %s1152
      %1158 = dma.vmem_to_hbm [thread:$0]  %s1153, 8192, %s4, [#allocation4], 256, 256, 16
    $region29: #{tpu_custom_call.1} parent=1 // pred_fallthru
      _
    // Predicated region
    $region30: #{tpu_custom_call.1} parent=1 // pred_check
      _
    $region31: #{tpu_custom_call.1} parent=1 // pred_check_branch
      %1160 = sbr.rel (0) target = $region33
    $region32: #{tpu_custom_call.1} parent=1 // pred_region
      %1161 = dma.done [#allocation4], 8192
    $region33: #{tpu_custom_call.1} parent=1 // pred_fallthru
      _
    %1162 = vsyncpa [#allocation3], 1
    %1163 = vsyncpa [#allocation6], 1
    %1164 = vsyncpa [#allocation4], 1

</llo_original>
